<compile_context>
chip_gen: v6e
topology: v6e:2x2x1
jax: 0.10.0
libtpu: 0.0.40
codegen_flags: <defaults>
</compile_context>

<pallas_src>
import functools

import jax
import jax.numpy as jnp
from jax.experimental import pallas as pl
from jax.experimental.pallas import tpu as pltpu


def _round_up(v, m):
    return (v + m - 1) // m * m


# ------------------------------- fused kernel -------------------------------


def _resmlp_fused_kernel(x_ref, w_ref, b_ref, o_ref, h_ref, *, nclass):
    """One grid step == one layer applied to one batch tile.

    x_ref : [tm, D]   f32  input rows (zero-padded features)
    w_ref : [1, D, D] bf16 this layer's (padded) weight
    b_ref : [1, 1, D] f32  this layer's (padded) bias
    o_ref : [tm, D]   f32  log-prob slab (written only at the last layer)
    h_ref : [tm, D]   f32  VMEM-resident activation, persists across layers
    """
    layer = pl.program_id(1)
    n_layers = pl.num_programs(1)

    # Layer 0: seed the resident activation with the (padded) input rows.
    @pl.when(layer == 0)
    def _():
        h_ref[...] = x_ref[...].astype(jnp.float32)

    h_in = h_ref[...]                                         # f32 [tm, D]
    y = jnp.dot(h_in.astype(jnp.bfloat16), w_ref[0],
                preferred_element_type=jnp.float32)           # MXU, f32 acc
    y = y + b_ref[0]                                          # [1, D] broadcast

    # First layer: relu, no residual.
    @pl.when(layer == 0)
    def _():
        h_ref[...] = jnp.maximum(y, 0.0)

    # Hidden layers 1 .. L-2: relu + residual with the layer input.
    @pl.when(jnp.logical_and(layer > 0, layer < n_layers - 1))
    def _():
        h_ref[...] = jnp.maximum(y, 0.0) + h_in

    # Final layer: mask padded class columns, stable log_softmax, write output.
    @pl.when(layer == n_layers - 1)
    def _():
        col = jax.lax.broadcasted_iota(jnp.int32, y.shape, 1)
        logits = jnp.where(col < nclass, y, -jnp.inf)
        m = jnp.max(logits, axis=1, keepdims=True)
        s = logits - m
        lse = jnp.log(jnp.sum(jnp.exp(s), axis=1, keepdims=True))
        o_ref[...] = (s - lse).astype(o_ref.dtype)


# -------------------------------- JAX wrapper --------------------------------


def resmlp_forward(x, weights, biases, *, max_batch_tile=128):
    """x: [N, nfeat] f32; weights[i]: [in_i, out_i] f32; biases[i]: [out_i] f32."""
    n_layers = len(weights)
    assert n_layers >= 2, "ResMLP needs at least an input and an output layer"
    nclass = weights[-1].shape[1]

    # Common lane-dense feature width (multiple of 128 covers all layer dims).
    dims = [x.shape[1]] + [w.shape[1] for w in weights]
    d_pad = _round_up(max(dims), 128)

    # Single-block weight streaming; for very wide layers add K/N tiling of the
    # weight instead (keeps the double-buffered weight DMA inside the scoped
    # VMEM budget, especially on v7x's 64 MiB).
    assert 2 * d_pad * d_pad * 2 <= 24 * 1024 * 1024, (
        "d_pad too large for single-block weight streaming; add K/N tiling")

    # Batch tiling (sublane-aligned rows).
    n = x.shape[0]
    tm = min(max_batch_tile, _round_up(n, 8))
    n_pad = _round_up(n, tm)

    # Pad + stack parameters: weights in bf16 (MXU inputs), biases in f32.
    w_stk = jnp.zeros((n_layers, d_pad, d_pad), jnp.bfloat16)
    b_stk = jnp.zeros((n_layers, 1, d_pad), jnp.float32)
    for i, (w, b) in enumerate(zip(weights, biases)):
        fin, fout = w.shape
        w_stk = w_stk.at[i, :fin, :fout].set(w.astype(jnp.bfloat16))
        b_stk = b_stk.at[i, 0, :fout].set(b.reshape(-1).astype(jnp.float32))

    x_pad = jnp.zeros((n_pad, d_pad), jnp.float32)
    x_pad = x_pad.at[:n, : x.shape[1]].set(x.astype(jnp.float32))

    grid = (n_pad // tm, n_layers)

    out = pl.pallas_call(
        functools.partial(_resmlp_fused_kernel, nclass=nclass),
        out_shape=jax.ShapeDtypeStruct((n_pad, d_pad), jnp.float32),
        grid_spec=pltpu.PrefetchScalarGridSpec(
            num_scalar_prefetch=0,
            grid=grid,
            in_specs=[
                # activation input: same block for every layer step (no re-DMA)
                pl.BlockSpec((tm, d_pad), lambda bi, l: (bi, 0)),
                # per-layer weight: streamed (double-buffered) along the layer axis
                pl.BlockSpec((1, d_pad, d_pad), lambda bi, l: (l, 0, 0)),
                # per-layer bias
                pl.BlockSpec((1, 1, d_pad), lambda bi, l: (l, 0, 0)),
            ],
            # same output block across the layer axis -> stays resident in VMEM,
            # written back to HBM once per batch tile.
            out_specs=pl.BlockSpec((tm, d_pad), lambda bi, l: (bi, 0)),
            scratch_shapes=[pltpu.VMEM((tm, d_pad), jnp.float32)],
        ),
        compiler_params=pltpu.CompilerParams(
            dimension_semantics=("parallel", "arbitrary"),
            vmem_limit_bytes=32 * 1024 * 1024,
        ),
    )(x_pad, w_stk, b_stk)

    return out[:n, :nclass]


# --------------------------- deterministic params ----------------------------


def init_resmlp_params(key, nfeat, nhid, nclass, nlayer, dtype=jnp.float32):
    """Mimics nn.Linear default init: U(-1/sqrt(fan_in), 1/sqrt(fan_in))."""
    dims = [(nfeat, nhid)] + [(nhid, nhid)] * (nlayer - 2) + [(nhid, nclass)]
    weights, biases = [], []
    for fin, fout in dims:
        key, kw, kb = jax.random.split(key, 3)
        bound = 1.0 / (fin ** 0.5)
        w = jax.random.uniform(kw, (fin, fout), dtype, minval=-bound, maxval=bound)
        b = jax.random.uniform(kb, (fout,), dtype, minval=-bound, maxval=bound)
        weights.append(w)
        biases.append(b)
    return weights, biases


# ------------------------------ pure-JAX reference ---------------------------


def _ref_forward(x, weights, biases):
    """Same math (bf16 matmul inputs, f32 accumulation) without Pallas."""
    h = x.astype(jnp.float32)
    for i in range(len(weights) - 1):
        y = jnp.dot(h.astype(jnp.bfloat16), weights[i].astype(jnp.bfloat16),
                    preferred_element_type=jnp.float32) + biases[i]
        a = jnp.maximum(y, 0.0)
        h = a if i == 0 else a + h
    logits = jnp.dot(h.astype(jnp.bfloat16), weights[-1].astype(jnp.bfloat16),
                     preferred_element_type=jnp.float32) + biases[-1]
    return jax.nn.log_softmax(logits, axis=1)


# ------------------------------------ main -----------------------------------

if __name__ == "__main__":
    # Small shapes consistent with the module (graph-style node features).
    N, nfeat, nhid, nclass, nlayer = 8, 16, 32, 8, 4   # act='relu', eval mode

    key = jax.random.PRNGKey(0)
    key, kx = jax.random.split(key)
    x = jax.random.normal(kx, (N, nfeat), jnp.float32)

    weights, biases = init_resmlp_params(key, nfeat, nhid, nclass, nlayer)

    out = resmlp_forward(x, weights, biases)
    out = jax.block_until_ready(out)

    # sanity: shape + rows must be valid log-probabilities
    assert out.shape == (N, nclass)
    row_sums = jnp.sum(jnp.exp(out), axis=1)
    assert bool(jnp.all(jnp.abs(row_sums - 1.0) < 1e-3))

    # cross-check against the pure-JAX reference (same bf16/f32 mixed precision)
    ref = _ref_forward(x, weights, biases)
    assert bool(jnp.max(jnp.abs(out - ref)) < 5e-2)

    print("KERNEL_OK")
</pallas_src>

<mosaic_0001>
module attributes {stable_mosaic.version = 11 : i64} {
  func.func @_resmlp_fused_kernel(%arg0: i32, %arg1: i32, %arg2: memref<8x128xf32, #tpu.memory_space<vmem>>, %arg3: memref<1x128x128xbf16, #tpu.memory_space<vmem>>, %arg4: memref<1x1x128xf32, #tpu.memory_space<vmem>>, %arg5: memref<8x128xf32, #tpu.memory_space<vmem>>, %arg6: memref<8x128xf32, #tpu.memory_space<vmem>>) attributes {dimension_semantics = [#tpu.dimension_semantics<parallel>, #tpu.dimension_semantics<arbitrary>], iteration_bounds = array<i64: 1, 4>, scalar_prefetch = 0 : i64, scratch_operands = 1 : i64, tpu.core_type = #tpu.core_type<tc>, window_params = [{transform_indices = @transform_0, window_bounds = array<i64: 8, 128>}, {transform_indices = @transform_1, window_bounds = array<i64: 1, 128, 128>}, {transform_indices = @transform_2, window_bounds = array<i64: 1, 1, 128>}, {transform_indices = @transform_3, window_bounds = array<i64: 8, 128>}]} {
    %c0_i32 = arith.constant 0 : i32
    %0 = arith.cmpi eq, %arg1, %c0_i32 : i32
    %1 = arith.extui %0 : i1 to i32
    %c0_i32_0 = arith.constant 0 : i32
    %2 = arith.cmpi ne, %1, %c0_i32_0 : i32
    scf.if %2 {
      %c0_14 = arith.constant 0 : index
      %c0_15 = arith.constant 0 : index
      %23 = vector.load %arg2[%c0_14, %c0_15] : memref<8x128xf32, #tpu.memory_space<vmem>>, vector<8x128xf32>
      %c0_16 = arith.constant 0 : index
      %c0_17 = arith.constant 0 : index
      %24 = vector.load %arg6[%c0_16, %c0_17] : memref<8x128xf32, #tpu.memory_space<vmem>>, vector<8x128xf32>
      tpu.vector_store %arg6[%c0_16, %c0_17], %23 {strides = array<i32>} : memref<8x128xf32, #tpu.memory_space<vmem>>, vector<8x128xf32>,
    } else {
    }
    %c0 = arith.constant 0 : index
    %c0_1 = arith.constant 0 : index
    %3 = vector.load %arg6[%c0, %c0_1] : memref<8x128xf32, #tpu.memory_space<vmem>>, vector<8x128xf32>
    %4 = arith.truncf %3 : vector<8x128xf32> to vector<8x128xbf16>
    %c0_2 = arith.constant 0 : index
    %c0_3 = arith.constant 0 : index
    %c0_4 = arith.constant 0 : index
    %5 = vector.load %arg3[%c0_2, %c0_3, %c0_4] : memref<1x128x128xbf16, #tpu.memory_space<vmem>>, vector<1x128x128xbf16>
    %6 = vector.shape_cast %5 : vector<1x128x128xbf16> to vector<128x128xbf16>
    %cst = arith.constant dense<0.000000e+00> : vector<8x128xf32>
    %7 = tpu.matmul %4, %6, %cst {dimension_numbers = #tpu.dot_dimension_numbers<[1], [0], [0], [1], [0, 0, 1, 1], [], []>} : vector<8x128xbf16>, vector<128x128xbf16>, vector<8x128xf32> -> vector<8x128xf32>
    %c0_5 = arith.constant 0 : index
    %c0_6 = arith.constant 0 : index
    %c0_7 = arith.constant 0 : index
    %8 = vector.load %arg4[%c0_5, %c0_6, %c0_7] : memref<1x1x128xf32, #tpu.memory_space<vmem>>, vector<1x1x128xf32>
    %9 = vector.shape_cast %8 : vector<1x1x128xf32> to vector<1x128xf32>
    %10 = vector.broadcast %9 : vector<1x128xf32> to vector<8x128xf32>
    %11 = arith.addf %7, %10 : vector<8x128xf32>
    %c0_i32_8 = arith.constant 0 : i32
    %12 = arith.cmpi eq, %arg1, %c0_i32_8 : i32
    %13 = arith.extui %12 : i1 to i32
    %c0_i32_9 = arith.constant 0 : i32
    %14 = arith.cmpi ne, %13, %c0_i32_9 : i32
    scf.if %14 {
      %cst_14 = arith.constant 0.000000e+00 : f32
      %23 = vector.broadcast %cst_14 : f32 to vector<8x128xf32>
      %24 = arith.maximumf %11, %23 : vector<8x128xf32>
      %c0_15 = arith.constant 0 : index
      %c0_16 = arith.constant 0 : index
      %25 = vector.load %arg6[%c0_15, %c0_16] : memref<8x128xf32, #tpu.memory_space<vmem>>, vector<8x128xf32>
      tpu.vector_store %arg6[%c0_15, %c0_16], %24 {strides = array<i32>} : memref<8x128xf32, #tpu.memory_space<vmem>>, vector<8x128xf32>,
    } else {
    }
    %c0_i32_10 = arith.constant 0 : i32
    %15 = arith.cmpi sgt, %arg1, %c0_i32_10 : i32
    %c3_i32 = arith.constant 3 : i32
    %16 = arith.cmpi slt, %arg1, %c3_i32 : i32
    %17 = arith.andi %15, %16 : i1
    %18 = arith.extui %17 : i1 to i32
    %c0_i32_11 = arith.constant 0 : i32
    %19 = arith.cmpi ne, %18, %c0_i32_11 : i32
    scf.if %19 {
      %cst_14 = arith.constant 0.000000e+00 : f32
      %23 = vector.broadcast %cst_14 : f32 to vector<8x128xf32>
      %24 = arith.maximumf %11, %23 : vector<8x128xf32>
      %25 = arith.addf %24, %3 : vector<8x128xf32>
      %c0_15 = arith.constant 0 : index
      %c0_16 = arith.constant 0 : index
      %26 = vector.load %arg6[%c0_15, %c0_16] : memref<8x128xf32, #tpu.memory_space<vmem>>, vector<8x128xf32>
      tpu.vector_store %arg6[%c0_15, %c0_16], %25 {strides = array<i32>} : memref<8x128xf32, #tpu.memory_space<vmem>>, vector<8x128xf32>,
    } else {
    }
    %c3_i32_12 = arith.constant 3 : i32
    %20 = arith.cmpi eq, %arg1, %c3_i32_12 : i32
    %21 = arith.extui %20 : i1 to i32
    %c0_i32_13 = arith.constant 0 : i32
    %22 = arith.cmpi ne, %21, %c0_i32_13 : i32
    scf.if %22 {
      %23 = tpu.iota {dimensions = array<i32: 1>} : vector<8x128xi32>
      %c8_i32 = arith.constant 8 : i32
      %24 = vector.broadcast %c8_i32 : i32 to vector<8x128xi32>
      %25 = arith.cmpi slt, %23, %24 : vector<8x128xi32>
      %cst_14 = arith.constant 0xFF800000 : f32
      %26 = vector.broadcast %cst_14 : f32 to vector<8x128xf32>
      %27 = arith.select %25, %11, %26 : vector<8x128xi1>, vector<8x128xf32>
      %cst_15 = arith.constant dense<0xFF800000> : vector<8xf32>
      %28 = vector.multi_reduction <maximumf>, %27, %cst_15 [1] : vector<8x128xf32> to vector<8xf32>
      %29 = vector.shape_cast %28 : vector<8xf32> to vector<8x1xf32>
      %30 = vector.broadcast %29 : vector<8x1xf32> to vector<8x128xf32>
      %31 = arith.subf %27, %30 : vector<8x128xf32>
      %32 = math.exp %31 : vector<8x128xf32>
      %cst_16 = arith.constant dense<0.000000e+00> : vector<8xf32>
      %33 = vector.multi_reduction <add>, %32, %cst_16 [1] : vector<8x128xf32> to vector<8xf32>
      %34 = vector.shape_cast %33 : vector<8xf32> to vector<8x1xf32>
      %35 = math.log %34 : vector<8x1xf32>
      %36 = vector.broadcast %35 : vector<8x1xf32> to vector<8x128xf32>
      %37 = arith.subf %31, %36 : vector<8x128xf32>
      %c0_17 = arith.constant 0 : index
      %c0_18 = arith.constant 0 : index
      %38 = vector.load %arg5[%c0_17, %c0_18] : memref<8x128xf32, #tpu.memory_space<vmem>>, vector<8x128xf32>
      tpu.vector_store %arg5[%c0_17, %c0_18], %37 {strides = array<i32>} : memref<8x128xf32, #tpu.memory_space<vmem>>, vector<8x128xf32>,
    } else {
    }
    return
  }
  func.func @transform_0(%arg0: i32, %arg1: i32) -> (i32, i32) {
    %c0_i32 = arith.constant 0 : i32
    %c0_i32_0 = arith.constant 0 : i32
    return %arg0, %c0_i32 : i32, i32
  }
  func.func @transform_1(%arg0: i32, %arg1: i32) -> (i32, i32, i32) {
    %c0_i32 = arith.constant 0 : i32
    %c0_i32_0 = arith.constant 0 : i32
    %c0_i32_1 = arith.constant 0 : i32
    return %arg1, %c0_i32, %c0_i32_0 : i32, i32, i32
  }
  func.func @transform_2(%arg0: i32, %arg1: i32) -> (i32, i32, i32) {
    %c0_i32 = arith.constant 0 : i32
    %c0_i32_0 = arith.constant 0 : i32
    %c0_i32_1 = arith.constant 0 : i32
    return %arg1, %c0_i32, %c0_i32_0 : i32, i32, i32
  }
  func.func @transform_3(%arg0: i32, %arg1: i32) -> (i32, i32) {
    %c0_i32 = arith.constant 0 : i32
    %c0_i32_0 = arith.constant 0 : i32
    return %arg0, %c0_i32 : i32, i32
  }
}

</mosaic_0001>

<llo_original>
// kernel: tpu_custom_call.1
$region0: #{tpu_custom_call.1}
  #allocation0 [shape = 'u32[]', space=smem, size = 0x4, offset = 0x4, fixed_abs, tag = 'smem constant byte address 0x4 - core index']
  #allocation1 [shape = 'u32[144,128]{1,0:T(1,128)}', space=vmem, size = 0x12000, scoped, tag = 'internal scratch']
  #allocation2 [shape = 'f32[8,128]{1,0:T(8,128)}', space=vmem, size = 0x1000, scoped, tag = 'scratch operand']
  %s0 = inlined_call_operand.hbm [shape: f32[8,128], index: 0, kind: input, shape index: {}]
  %s1 = inlined_call_operand.hbm [shape: bf16[4,128,128], index: 1, kind: input, shape index: {}]
  %s2 = inlined_call_operand.hbm [shape: f32[4,1,128], index: 2, kind: input, shape index: {}]
  %s3 = inlined_call_operand.hbm [shape: f32[8,128], index: 3, kind: output, shape index: {}]
  %s4 = sld [smem:[#allocation0]]
  $region73: #{tpu_custom_call.1} parent=0
    _
  %s6 = ssub.s32 1, %s4
  %s7 = scalar_select 0, %s6, %s4
  $region1: #{tpu_custom_call.1} parent=0
    #allocation3 [shape = 'u8[4096]{0}', space=vmem, size = 0x1000, scoped, tag = 'input window, operand 0, single buffered']
    #allocation4 [shape = 's32[2]{0}', space=sflag, size = 0x8, scoped, tag = 'scoped memory for tpu_custom_call.1']
    #allocation5 [shape = 's32[2]{0}', space=sflag, size = 0x8, scoped, tag = 'scoped memory for tpu_custom_call.1']
    #allocation6 [shape = 'u8[65536]{0}', space=vmem, size = 0x10000, scoped, tag = 'input window, operand 1']
    #allocation7 [shape = 's32[2]{0}', space=sflag, size = 0x8, scoped, tag = 'scoped memory for tpu_custom_call.1']
    #allocation8 [shape = 'u8[1024]{0}', space=vmem, size = 0x400, scoped, tag = 'input window, operand 2']
    #allocation9 [shape = 'u8[4096]{0}', space=vmem, size = 0x1000, scoped, tag = 'output window, operand 0, single buffered']
    %8 = vsyncpa [#allocation4], 0
    %9 = vsyncpa [#allocation7], 0
    %s10 = scalar_lea.sflag [#allocation7], 1
    %11 = vsyncpa %s10, 0
    %12 = vsyncpa [#allocation5], 0
    loop: start=0, step=1, limit=6
    $region2: #{tpu_custom_call.1} parent=1 // loop_pre_header
      _
    $region3: #{tpu_custom_call.1} parent=1 // loop_header
      %s14 = sphi 0, %s18
      %p15 = scmp.ge.s32.totalorder %s14, 6
      %s21 = sphi 0, %s33
      %s22 = sphi 0, %s29
      %s23 = sphi 0, %s21
      %s24 = sphi 0, %s22
      %s25 = sphi 0, %s23
      %s26 = sphi 0, %s24
      %s36 = sphi 0, %s38
      %s39 = sphi 0, %s36
      %s40 = sphi 0, %s39
      %s56 = sphi 0, %s40
      %s62 = sphi 0, %s64
      %s65 = sphi 0, %s62
      %s66 = sphi 0, %s65
      %s82 = sphi 0, %s66
      %s88 = sphi 0, %s90
      %s91 = sphi 0, %s88
      %s92 = sphi 0, %s91
      %s108 = sphi 0, %s92
      %s114 = sphi 0, %s116
      %s117 = sphi 0, %s114
      %s118 = sphi 0, %s117
      %s134 = sphi 0, %s118
    $region4: #{tpu_custom_call.1} parent=1 // loop_header_branch
      %17 = sbr.rel (%p15) target = $region8
    $region5: #{tpu_custom_call.1} parent=1 // loop_body
      %s19 = ssub.s32 %s14, 1
      %s20 = ssub.s32 %s14, 2
      %s27 = sadd.s32 1, %s22
      %p28 = scmp.ge.s32.totalorder %s27, 4
      %s29 = scalar_select %p28, 0, %s27
      %s30 = sadd.s32 1, %s21
      %s31 = scalar_select %p28, %s30, %s21
      %p32 = scmp.ge.s32.totalorder %s31, 1
      %s33 = scalar_select %p32, 0, %s31
      %s34 = ssub.s32 %s21, %s33
      %p35 = scmp.eq.s32.totalorder %s34, 0
      %s37 = sadd.s32 %s36, 1
      %s38 = scalar_select %p35, %s36, %s37
      %p41 = pneg %p35
      %p42 = scmp.eq.s32.totalorder %s14, 3
      %p43 = por %p41, %p42
      %p44 = scmp.ne.s32.totalorder %s36, %s39
      %p45 = scmp.eq.s32.totalorder %s14, 0
      %p46 = por %p44, %p45
      %p47 = scmp.ne.s32.totalorder %s36, %s39
      %p48 = scmp.eq.s32.totalorder %s19, 3
      %p49 = por %p47, %p48
      %p50 = scmp.ne.s32.totalorder %s39, %s40
      %p51 = scmp.eq.s32.totalorder %s19, 0
      %p52 = por %p50, %p51
      %p53 = scmp.ne.s32.totalorder %s39, %s40
      %p54 = scmp.eq.s32.totalorder %s20, 3
      %p55 = por %p53, %p54
      %p57 = scmp.ne.s32.totalorder %s40, %s56
      %p58 = scmp.eq.s32.totalorder %s20, 0
      %p59 = por %p57, %p58
      %s60 = ssub.s32 %s22, %s29
      %p61 = scmp.eq.s32.totalorder %s60, 0
      %s63 = sadd.s32 %s62, 1
      %s64 = scalar_select %p61, %s62, %s63
      %p67 = pneg %p61
      %p68 = scmp.eq.s32.totalorder %s14, 3
      %p69 = por %p67, %p68
      %p70 = scmp.ne.s32.totalorder %s62, %s65
      %p71 = scmp.eq.s32.totalorder %s14, 0
      %p72 = por %p70, %p71
      %p73 = scmp.ne.s32.totalorder %s62, %s65
      %p74 = scmp.eq.s32.totalorder %s19, 3
      %p75 = por %p73, %p74
      %p76 = scmp.ne.s32.totalorder %s65, %s66
      %p77 = scmp.eq.s32.totalorder %s19, 0
      %p78 = por %p76, %p77
      %p79 = scmp.ne.s32.totalorder %s65, %s66
      %p80 = scmp.eq.s32.totalorder %s20, 3
      %p81 = por %p79, %p80
      %p83 = scmp.ne.s32.totalorder %s66, %s82
      %p84 = scmp.eq.s32.totalorder %s20, 0
      %p85 = por %p83, %p84
      %s86 = ssub.s32 %s22, %s29
      %p87 = scmp.eq.s32.totalorder %s86, 0
      %s89 = sadd.s32 %s88, 1
      %s90 = scalar_select %p87, %s88, %s89
      %p93 = pneg %p87
      %p94 = scmp.eq.s32.totalorder %s14, 3
      %p95 = por %p93, %p94
      %p96 = scmp.ne.s32.totalorder %s88, %s91
      %p97 = scmp.eq.s32.totalorder %s14, 0
      %p98 = por %p96, %p97
      %p99 = scmp.ne.s32.totalorder %s88, %s91
      %p100 = scmp.eq.s32.totalorder %s19, 3
      %p101 = por %p99, %p100
      %p102 = scmp.ne.s32.totalorder %s91, %s92
      %p103 = scmp.eq.s32.totalorder %s19, 0
      %p104 = por %p102, %p103
      %p105 = scmp.ne.s32.totalorder %s91, %s92
      %p106 = scmp.eq.s32.totalorder %s20, 3
      %p107 = por %p105, %p106
      %p109 = scmp.ne.s32.totalorder %s92, %s108
      %p110 = scmp.eq.s32.totalorder %s20, 0
      %p111 = por %p109, %p110
      %s112 = ssub.s32 %s21, %s33
      %p113 = scmp.eq.s32.totalorder %s112, 0
      %s115 = sadd.s32 %s114, 1
      %s116 = scalar_select %p113, %s114, %s115
      %p119 = pneg %p113
      %p120 = scmp.eq.s32.totalorder %s14, 3
      %p121 = por %p119, %p120
      %p122 = scmp.ne.s32.totalorder %s114, %s117
      %p123 = scmp.eq.s32.totalorder %s14, 0
      %p124 = por %p122, %p123
      %p125 = scmp.ne.s32.totalorder %s114, %s117
      %p126 = scmp.eq.s32.totalorder %s19, 3
      %p127 = por %p125, %p126
      %p128 = scmp.ne.s32.totalorder %s117, %s118
      %p129 = scmp.eq.s32.totalorder %s19, 0
      %p130 = por %p128, %p129
      %p131 = scmp.ne.s32.totalorder %s117, %s118
      %p132 = scmp.eq.s32.totalorder %s20, 3
      %p133 = por %p131, %p132
      %p135 = scmp.ne.s32.totalorder %s118, %s134
      %p136 = scmp.eq.s32.totalorder %s20, 0
      %p137 = por %p135, %p136
      %p138 = scmp.le.s32.totalorder 1, %s14
      %p139 = scmp.lt.s32.totalorder %s14, 5
      %p140 = pnand %p138, %p139
      %p141 = pneg %p140
      // Predicated region
      $region9: #{tpu_custom_call.1} parent=5 // pred_check
        _
      $region10: #{tpu_custom_call.1} parent=5 // pred_check_branch
        %143 = sbr.rel (%p140) target = $region12
      $region11: #{tpu_custom_call.1} parent=5 // pred_region
        %s144 = ssub.s32 %s14, 1
        // Predicated region
        $region13: #{tpu_custom_call.1} parent=11 // pred_check
          %p145 = pneg %p52
        $region14: #{tpu_custom_call.1} parent=11 // pred_check_branch
          %147 = sbr.rel (%p145) target = $region16
        $region15: #{tpu_custom_call.1} parent=11 // pred_region
          %s149 = ssub.s32 128, 128
          %150 = vsyncadd [#allocation4], %s149
          %s151 = smul.addr %s23, 128
          %s152 = scalar_lea.hbm %s0, %s151
          %s154 = sshll.u32 [#allocation3], 4
          %s155 = int_to_ptr.vmem [resolvable:$true] %s154
          %157 = dma.hbm_to_vmem [thread:$0]  %s152, 128, %s155, [#allocation4]
        $region16: #{tpu_custom_call.1} parent=11 // pred_fallthru
          _
      $region12: #{tpu_custom_call.1} parent=5 // pred_fallthru
        _
      %p158 = scmp.lt.s32.totalorder %s14, 4
      // Predicated region
      $region17: #{tpu_custom_call.1} parent=5 // pred_check
        %p159 = pneg %p158
      $region18: #{tpu_custom_call.1} parent=5 // pred_check_branch
        %161 = sbr.rel (%p159) target = $region20
      $region19: #{tpu_custom_call.1} parent=5 // pred_region
        // Predicated region
        $region21: #{tpu_custom_call.1} parent=19 // pred_check
          %p162 = pneg %p72
        $region22: #{tpu_custom_call.1} parent=19 // pred_check_branch
          %164 = sbr.rel (%p162) target = $region24
        $region23: #{tpu_custom_call.1} parent=19 // pred_region
          %s165 = sand.u32 %s14, 1
          %s166 = scalar_lea.sflag [#allocation7], %s165
          %s167 = sand.u32 %s62, 1
          %s168 = smul.addr %s167, 64
          %s169 = scalar_lea.vmem [#allocation6], %s168
          %s171 = ssub.s32 1024, 1024
          %172 = vsyncadd %s166, %s171
          %s173 = smul.addr %s22, 16
          %s174 = smul.addr %s173, 64
          %s175 = scalar_lea.hbm %s1, %s174
          %s176 = sshll.u32 %s169, 4
          %s177 = int_to_ptr.vmem [resolvable:$true] %s176
          %182 = dma.hbm_to_vmem [thread:$0]  %s175, 1024, %s177, %s166, 64, 64, 4
        $region24: #{tpu_custom_call.1} parent=19 // pred_fallthru
          _
        // Predicated region
        $region25: #{tpu_custom_call.1} parent=19 // pred_check
          %p183 = pneg %p98
        $region26: #{tpu_custom_call.1} parent=19 // pred_check_branch
          %185 = sbr.rel (%p183) target = $region28
        $region27: #{tpu_custom_call.1} parent=19 // pred_region
          %s186 = sand.u32 %s14, 1
          %s187 = scalar_lea.sflag [#allocation7], %s186
          %s188 = sand.u32 %s88, 1
          %s189 = scalar_lea.vmem [#allocation8], %s188
          %s191 = ssub.s32 16, 16
          %192 = vsyncadd %s187, %s191
          %s193 = smul.addr %s22, 16
          %s194 = scalar_lea.hbm %s2, %s193
          %s196 = sshll.u32 %s189, 4
          %s197 = int_to_ptr.vmem [resolvable:$true] %s196
          %199 = dma.hbm_to_vmem [thread:$0]  %s194, 16, %s197, %s187
        $region28: #{tpu_custom_call.1} parent=19 // pred_fallthru
          _
      $region20: #{tpu_custom_call.1} parent=5 // pred_fallthru
        _
      %p200 = scmp.le.s32.totalorder 1, %s14
      %p201 = scmp.lt.s32.totalorder %s14, 5
      %p202 = pnand %p200, %p201
      %p203 = pneg %p202
      // Predicated region
      $region29: #{tpu_custom_call.1} parent=5 // pred_check
        _
      $region30: #{tpu_custom_call.1} parent=5 // pred_check_branch
        %205 = sbr.rel (%p202) target = $region32
      $region31: #{tpu_custom_call.1} parent=5 // pred_region
        %s206 = ssub.s32 %s14, 1
        // Predicated region
        $region33: #{tpu_custom_call.1} parent=31 // pred_check
          %p207 = pneg %p52
        $region34: #{tpu_custom_call.1} parent=31 // pred_check_branch
          %209 = sbr.rel (%p207) target = $region36
        $region35: #{tpu_custom_call.1} parent=31 // pred_region
          %210 = dma.done [#allocation4], 128
        $region36: #{tpu_custom_call.1} parent=31 // pred_fallthru
          _
        %s211 = sand.u32 %s19, 1
        %s212 = scalar_lea.sflag [#allocation7], %s211
        %s213 = sand.u32 %s65, 1
        %s214 = smul.addr %s213, 64
        %s215 = scalar_lea.vmem [#allocation6], %s214
        // Predicated region
        $region37: #{tpu_custom_call.1} parent=31 // pred_check
          %p216 = pneg %p78
        $region38: #{tpu_custom_call.1} parent=31 // pred_check_branch
          %218 = sbr.rel (%p216) target = $region40
        $region39: #{tpu_custom_call.1} parent=31 // pred_region
          %219 = dma.done %s212, 1024
        $region40: #{tpu_custom_call.1} parent=31 // pred_fallthru
          _
        %s220 = sand.u32 %s19, 1
        %s221 = scalar_lea.sflag [#allocation7], %s220
        %s222 = sand.u32 %s91, 1
        %s223 = scalar_lea.vmem [#allocation8], %s222
        // Predicated region
        $region41: #{tpu_custom_call.1} parent=31 // pred_check
          %p224 = pneg %p104
        $region42: #{tpu_custom_call.1} parent=31 // pred_check_branch
          %226 = sbr.rel (%p224) target = $region44
        $region43: #{tpu_custom_call.1} parent=31 // pred_region
          %227 = dma.done %s221, 16
        $region44: #{tpu_custom_call.1} parent=31 // pred_fallthru
          _
        %p228 = pneg %p52
        %p229 = pneg %p49
        %s230 = sand.u32 %s19, 1
        %s231 = scalar_lea.sflag [#allocation7], %s230
        %s232 = sand.u32 %s65, 1
        %s233 = smul.addr %s232, 64
        %s234 = scalar_lea.vmem [#allocation6], %s233
        %p235 = pneg %p78
        %p236 = pneg %p75
        %s237 = sand.u32 %s19, 1
        %s238 = scalar_lea.sflag [#allocation7], %s237
        %s239 = sand.u32 %s91, 1
        %s240 = scalar_lea.vmem [#allocation8], %s239
        %p241 = pneg %p104
        %p242 = pneg %p101
        %p243 = pneg %p130
        %p244 = pneg %p127
        %p246 = scmp.eq.s32.totalorder %s24, 0
        // Predicated region
        $region45: #{tpu_custom_call.1} parent=31 // pred_check
          %p247 = pneg %p246
        $region46: #{tpu_custom_call.1} parent=31 // pred_check_branch
          %249 = sbr.rel (%p247) target = $region48
        $region47: #{tpu_custom_call.1} parent=31 // pred_region
          %v250 = vld [vmem:[#allocation3] sm:$0xff]
          %251 = vst [vmem:[#allocation2] sm:$0xff] %v250
        $region48: #{tpu_custom_call.1} parent=31 // pred_fallthru
          _
        %v252 = vld [vmem:[#allocation2] sm:$0xff]
        %v253 = vpack.c.bf16 %v252, %v252
        %v254 = vld [vmem:[%s215] sm:$0xf]
        %v255 = vld [vmem:[%s215 + $0x4] sm:$0xf]
        %v256 = vld [vmem:[%s215 + $0x8] sm:$0xf]
        %v257 = vld [vmem:[%s215 + $0xc] sm:$0xf]
        %v258 = vld [vmem:[%s215 + $0x10] sm:$0xf]
        %v259 = vld [vmem:[%s215 + $0x14] sm:$0xf]
        %v260 = vld [vmem:[%s215 + $0x18] sm:$0xf]
        %v261 = vld [vmem:[%s215 + $0x1c] sm:$0xf]
        %v262 = vld [vmem:[%s215 + $0x20] sm:$0xf]
        %v263 = vld [vmem:[%s215 + $0x24] sm:$0xf]
        %v264 = vld [vmem:[%s215 + $0x28] sm:$0xf]
        %v265 = vld [vmem:[%s215 + $0x2c] sm:$0xf]
        %v266 = vld [vmem:[%s215 + $0x30] sm:$0xf]
        %v267 = vld [vmem:[%s215 + $0x34] sm:$0xf]
        %v268 = vld [vmem:[%s215 + $0x38] sm:$0xf]
        %v269 = vld [vmem:[%s215 + $0x3c] sm:$0xf]
        %v270 = vld [vmem:[%s223] sm:$0x1]
        %v272 = vlaneseq
        %v273 = vshrl.u32 %v272, 7
        %v274 = vsub.s32 0, %v273
        %v275 = vrot.slane %v270, %v274
        %v293 = vunpack.c.l.b16 %v254
        %v294 = vunpack.c.l.b16 %v255
        %v295 = vunpack.c.l.b16 %v256
        %v296 = vunpack.c.l.b16 %v257
        %v297 = vunpack.c.l.b16 %v258
        %v298 = vunpack.c.l.b16 %v259
        %v299 = vunpack.c.l.b16 %v260
        %v300 = vunpack.c.l.b16 %v261
        %v301 = vunpack.c.l.b16 %v262
        %v302 = vunpack.c.l.b16 %v263
        %v303 = vunpack.c.l.b16 %v264
        %v304 = vunpack.c.l.b16 %v265
        %v305 = vunpack.c.l.b16 %v266
        %v306 = vunpack.c.l.b16 %v267
        %v307 = vunpack.c.l.b16 %v268
        %v308 = vunpack.c.l.b16 %v269
        %v309 = vpack.c.b16 %v294, %v293
        %v310 = vpack.c.b16 %v296, %v295
        %v311 = vpack.c.b16 %v298, %v297
        %v312 = vpack.c.b16 %v300, %v299
        %v313 = vpack.c.b16 %v302, %v301
        %v314 = vpack.c.b16 %v304, %v303
        %v315 = vpack.c.b16 %v306, %v305
        %v316 = vpack.c.b16 %v308, %v307
        %325 = vmatprep.subr.bf16.mxu0 0
        %326 = vmatpush1.bf16.msra.mxu0 %v316
        %327 = vmatprep.subr.bf16.mxu0 0
        %328 = vmatpush1.bf16.msra.mxu0 %v315
        %329 = vmatprep.subr.bf16.mxu0 0
        %330 = vmatpush1.bf16.msra.mxu0 %v314
        %331 = vmatprep.subr.bf16.mxu0 0
        %332 = vmatpush1.bf16.msra.mxu0 %v313
        %333 = vmatprep.subr.bf16.mxu0 0
        %334 = vmatpush1.bf16.msra.mxu0 %v312
        %335 = vmatprep.subr.bf16.mxu0 0
        %336 = vmatpush1.bf16.msra.mxu0 %v311
        %337 = vmatprep.subr.bf16.mxu0 0
        %338 = vmatpush1.bf16.msra.mxu0 %v310
        %339 = vmatprep.subr.bf16.mxu0 0
        %340 = vmatpush1.bf16.msra.mxu0 %v309
        %341 = vmatprep.subr.bf16.mxu0 0
        %342 = vmatpush2.bf16.msra.mxu0 0
        %343 = vmatprep.subr.bf16.mxu0 0
        %344 = vmatpush2.bf16.msra.mxu0 0
        %345 = vmatprep.subr.bf16.mxu0 0
        %346 = vmatpush2.bf16.msra.mxu0 0
        %347 = vmatprep.subr.bf16.mxu0 0
        %348 = vmatpush2.bf16.msra.mxu0 0
        %349 = vmatprep.subr.bf16.mxu0 0
        %350 = vmatpush2.bf16.msra.mxu0 0
        %351 = vmatprep.subr.bf16.mxu0 0
        %352 = vmatpush2.bf16.msra.mxu0 0
        %353 = vmatprep.subr.bf16.mxu0 0
        %354 = vmatpush2.bf16.msra.mxu0 0
        %355 = vmatprep.subr.bf16.mxu0 0
        %356 = vmatpush2.bf16.msra.mxu0 0
        %357 = vmatprep.mubr.bf16.mxu0 0
        %358 = vmatmul.mubr.bf16.gmra.mxu0 %v253
        %v359 = vpop.f32.mrf.mxu0
        %v360 = vadd.f32 %v275, %v359
        %v361 = vpop.f32.mrf.mxu0
        %v362 = vpop.f32.mrf.mxu0
        %v363 = vpop.f32.mrf.mxu0
        %364 = vdwg.mxu0
        // Predicated region
        $region49: #{tpu_custom_call.1} parent=31 // pred_check
          %p365 = pneg %p246
        $region50: #{tpu_custom_call.1} parent=31 // pred_check_branch
          %367 = sbr.rel (%p365) target = $region52
        $region51: #{tpu_custom_call.1} parent=31 // pred_region
          %v368 = vmax.f32 %v360, 0.0
          %369 = vst [vmem:[#allocation2] sm:$0xff] %v368
        $region52: #{tpu_custom_call.1} parent=31 // pred_fallthru
          _
        %p370 = scmp.gt.s32.totalorder %s24, 0
        %p371 = scmp.lt.s32.totalorder %s24, 3
        %p372 = pnand %p370, %p371
        %p373 = pneg %p372
        // Predicated region
        $region53: #{tpu_custom_call.1} parent=31 // pred_check
          _
        $region54: #{tpu_custom_call.1} parent=31 // pred_check_branch
          %375 = sbr.rel (%p372) target = $region56
        $region55: #{tpu_custom_call.1} parent=31 // pred_region
          %v376 = vmax.f32 %v360, 0.0
          %v377 = vadd.f32 %v376, %v252
          %378 = vst [vmem:[#allocation2] sm:$0xff] %v377
        $region56: #{tpu_custom_call.1} parent=31 // pred_fallthru
          _
        %p379 = scmp.eq.s32.totalorder %s24, 3
        // Predicated region
        $region57: #{tpu_custom_call.1} parent=31 // pred_check
          %p380 = pneg %p379
        $region58: #{tpu_custom_call.1} parent=31 // pred_check_branch
          %382 = sbr.rel (%p380) target = $region60
        $region59: #{tpu_custom_call.1} parent=31 // pred_region
          %v383 = vlaneseq
          %v384 = vand.u32 %v383, 127
          %vm385 = vcmp.lt.s32.totalorder %v384, 8
          %v386 = vsel %vm385, %v360, -inf
          %387 = vmax.xlane.f32.xlu0 %v386
          %v388 = vpop.xlane.xlu0 %387
          %v389 = vsub.f32 %v386, %v388
          %v390 = vmul.f32 %v389, 1.442695
          %v391 = vpow.pop %v390
          %392 = vadd.xlane.f32.xlu0 %v391
          %v393 = vpop.xlane.xlu0 %392
          %v394 = vlog2.pop %v393
          %v395 = vmul.f32 %v394, 0.6931472
          %v396 = vsub.f32 %v389, %v395
          %397 = vst [vmem:[#allocation9] sm:$0xff] %v396
        $region60: #{tpu_custom_call.1} parent=31 // pred_fallthru
          _
        // Predicated region
        $region61: #{tpu_custom_call.1} parent=31 // pred_check
          %p398 = pneg %p127
        $region62: #{tpu_custom_call.1} parent=31 // pred_check_branch
          %400 = sbr.rel (%p398) target = $region64
        $region63: #{tpu_custom_call.1} parent=31 // pred_region
          %s402 = ssub.s32 128, 128
          %403 = vsyncadd [#allocation5], %s402
          %s404 = smul.addr %s23, 128
          %s405 = scalar_lea.hbm %s3, %s404
          %s407 = sshll.u32 [#allocation9], 4
          %s408 = int_to_ptr.vmem [resolvable:$true] %s407
          %410 = dma.vmem_to_hbm [thread:$0]  %s408, 128, %s405, [#allocation5]
        $region64: #{tpu_custom_call.1} parent=31 // pred_fallthru
          _
        // Predicated region
        $region65: #{tpu_custom_call.1} parent=31 // pred_check
          %p411 = pneg %p127
        $region66: #{tpu_custom_call.1} parent=31 // pred_check_branch
          %413 = sbr.rel (%p411) target = $region68
        $region67: #{tpu_custom_call.1} parent=31 // pred_region
          %414 = dma.done [#allocation5], 128
        $region68: #{tpu_custom_call.1} parent=31 // pred_fallthru
          _
      $region32: #{tpu_custom_call.1} parent=5 // pred_fallthru
        _
      %p415 = scmp.le.s32.totalorder 2, %s14
      // Predicated region
      $region69: #{tpu_custom_call.1} parent=5 // pred_check
        %p416 = pneg %p415
      $region70: #{tpu_custom_call.1} parent=5 // pred_check_branch
        %418 = sbr.rel (%p416) target = $region72
      $region71: #{tpu_custom_call.1} parent=5 // pred_region
        %s419 = ssub.s32 %s14, 2
      $region72: #{tpu_custom_call.1} parent=5 // pred_fallthru
        _
    $region6: #{tpu_custom_call.1} parent=1 // loop_footer
      %s18 = sadd.s32 1, %s14
    $region7: #{tpu_custom_call.1} parent=1 // loop_footer_branch
      %13 = sbr.rel target = $region3
    $region8: #{tpu_custom_call.1} parent=1 // loop_exit
      _
    %420 = vsyncpa [#allocation4], 1
    %s421 = scalar_lea.sflag [#allocation4], 1
    %422 = vsyncpa %s421, 1
    %423 = vsyncpa [#allocation7], 1
    %s424 = scalar_lea.sflag [#allocation7], 1
    %425 = vsyncpa %s424, 1
    %426 = vsyncpa [#allocation5], 1
    %s427 = scalar_lea.sflag [#allocation5], 1
    %428 = vsyncpa %s427, 1

</llo_original>
